<compile_context>
chip_gen: v5e
topology: v5e:2x2
jax: 0.10.0
libtpu: 0.0.40
codegen_flags: <defaults>
</compile_context>

<pallas_src>
import jax
import jax.numpy as jnp
from jax.experimental import pallas as pl
from jax.experimental.pallas import tpu as pltpu

BATCH_SIZE = 20

INPUT_SIZE = 1
OUTPUT_SIZE = 1
H1, H2, H3, H4 = 256, 128, 64, 16

# Row offsets of each fused weight block inside the packed weight slab.
_W2_OFF = 0                     # (256, 128)
_W3_OFF = _W2_OFF + H1          # 256   (128, 128) = [w31 | w32]
_W4_OFF = _W3_OFF + H2          # 384   (128, 128) block-diag(w41, w42) in cols 0:32
_W5_OFF = _W4_OFF + 2 * H3      # 512   (32, 128)  block-diag(w51, w52) in cols 0:2
_W_ROWS = _W5_OFF + 2 * H4      # 544
_W_LANES = H2                   # 128

_R_LANES = H1                   # 256
_R_ROWS = 8                     # padded to a full sublane tile


def net_kernel(x_ref, w_ref, r_ref, out_ref):
    x = x_ref[0]                                         # (B, 1) f32

    # Row slab layout: [w1; b1; b2; b3; b4; b5; pad; pad]  (all f32).
    w1 = r_ref[0:1, :]                                   # (1, 256)
    b1 = r_ref[1:2, :]                                   # (1, 256)
    b2 = r_ref[2:3, 0:H2]                                # (1, 128)
    b3 = r_ref[3:4, 0:2 * H3]                            # (1, 128)
    b4 = r_ref[4:5, 0:2 * H4]                            # (1, 32)
    b5 = r_ref[5:6, 0:2 * OUTPUT_SIZE]                   # (1, 2)

    bf16 = jnp.bfloat16

    # Layer 1: contraction dim is 1 -> VPU broadcast outer product (f32).
    h1 = jnp.maximum(x * w1 + b1, 0.0)                   # (B, 256)

    # Layer 2 (bf16 MXU operands, f32 accumulation).
    w2 = w_ref[_W2_OFF:_W2_OFF + H1, :]                  # (256, 128) bf16
    h2 = jnp.maximum(
        jnp.dot(h1.astype(bf16), w2,
                preferred_element_type=jnp.float32) + b2, 0.0)           # (B, 128)

    # Layers 3_1 / 3_2 fused (lane-dense 128-wide output).
    w3 = w_ref[_W3_OFF:_W3_OFF + H2, :]                  # (128, 128) bf16
    h3 = jnp.maximum(
        jnp.dot(h2.astype(bf16), w3,
                preferred_element_type=jnp.float32) + b3, 0.0)           # (B, 128)

    # Layers 4_1 / 4_2 fused: block-diag(w41, w42).
    w4 = w_ref[_W4_OFF:_W4_OFF + 2 * H3, 0:2 * H4]       # (128, 32) bf16
    h4 = jnp.maximum(
        jnp.dot(h3.astype(bf16), w4,
                preferred_element_type=jnp.float32) + b4, 0.0)           # (B, 32)

    # Layers 5_1 / 5_2 fused: block-diag(w51, w52) emits [x5, y5] directly
    # (column 0 = layer_5_1, column 1 = layer_5_2, matching torch.concat order).
    w5 = w_ref[_W5_OFF:_W5_OFF + 2 * H4, 0:2 * OUTPUT_SIZE]              # (32, 2) bf16
    out_ref[0] = jnp.maximum(
        jnp.dot(h4.astype(bf16), w5,
                preferred_element_type=jnp.float32) + b5, 0.0)           # (B, 2)


def init_params(key):
    """Deterministic init matching nn.Linear shapes (stored as (in, out))."""
    sizes = [
        (INPUT_SIZE, H1),   # layer_1
        (H1, H2),           # layer_2
        (H2, H3),           # layer_3_1
        (H2, H3),           # layer_3_2
        (H3, H4),           # layer_4_1
        (H3, H4),           # layer_4_2
        (H4, OUTPUT_SIZE),  # layer_5_1
        (H4, OUTPUT_SIZE),  # layer_5_2
    ]
    params = []
    for (fan_in, fan_out) in sizes:
        key, kw, kb = jax.random.split(key, 3)
        bound = 1.0 / jnp.sqrt(float(fan_in))
        w = jax.random.uniform(kw, (fan_in, fan_out), jnp.float32, -bound, bound)
        b = jax.random.uniform(kb, (1, fan_out), jnp.float32, -bound, bound)
        params.append((w, b))
    return params


def pack_params(params):
    """Pack the 8 (w, b) pairs into one bf16 weight slab + one f32 bias/row slab."""
    (w1, b1), (w2, b2), (w31, b31), (w32, b32), \
        (w41, b41), (w42, b42), (w51, b51), (w52, b52) = params

    # Fused branch weights (zero off-diagonal blocks keep results exact).
    w3 = jnp.concatenate([w31, w32], axis=1)                         # (128, 128)

    w4 = jnp.zeros((2 * H3, _W_LANES), jnp.float32)
    w4 = w4.at[:H3, :H4].set(w41)
    w4 = w4.at[H3:, H4:2 * H4].set(w42)                              # (128, 128), used cols 0:32

    w5 = jnp.zeros((2 * H4, _W_LANES), jnp.float32)
    w5 = w5.at[:H4, 0:OUTPUT_SIZE].set(w51)
    w5 = w5.at[H4:, OUTPUT_SIZE:2 * OUTPUT_SIZE].set(w52)            # (32, 128), used cols 0:2

    w_slab = jnp.concatenate([w2, w3, w4, w5], axis=0)               # (544, 128)
    assert w_slab.shape == (_W_ROWS, _W_LANES), w_slab.shape
    w_slab = w_slab.astype(jnp.bfloat16)                             # halve the dominant DMA

    def row(v):
        v = v.reshape(1, -1).astype(jnp.float32)
        return jnp.pad(v, ((0, 0), (0, _R_LANES - v.shape[1])))

    r_slab = jnp.concatenate([
        row(w1),                                        # layer-1 weight as a row
        row(b1),
        row(b2),
        row(jnp.concatenate([b31, b32], axis=1)),
        row(jnp.concatenate([b41, b42], axis=1)),
        row(jnp.concatenate([b51, b52], axis=1)),
        jnp.zeros((_R_ROWS - 6, _R_LANES), jnp.float32),
    ], axis=0)                                                       # (8, 256) f32
    return w_slab, r_slab


def net_forward_batched(xs, w_slab, r_slab):
    """Evaluate N independent (BATCH_SIZE, 1) batches in one pallas_call.

    Weights/biases use constant index_maps -> DMA'd once, VMEM-resident across
    all grid iterations; x / out are pipelined per grid step; the batch axis is
    "parallel" so v7x can use both TensorCores.
    """
    n = xs.shape[0]
    xs = xs.reshape(n, BATCH_SIZE, INPUT_SIZE).astype(jnp.float32)
    return pl.pallas_call(
        net_kernel,
        out_shape=jax.ShapeDtypeStruct((n, BATCH_SIZE, 2 * OUTPUT_SIZE), jnp.float32),
        grid_spec=pltpu.PrefetchScalarGridSpec(
            num_scalar_prefetch=0,
            grid=(n,),
            in_specs=[
                pl.BlockSpec((1, BATCH_SIZE, INPUT_SIZE), lambda i: (i, 0, 0)),
                pl.BlockSpec((_W_ROWS, _W_LANES), lambda i: (0, 0)),
                pl.BlockSpec((_R_ROWS, _R_LANES), lambda i: (0, 0)),
            ],
            out_specs=pl.BlockSpec((1, BATCH_SIZE, 2 * OUTPUT_SIZE),
                                   lambda i: (i, 0, 0)),
        ),
        compiler_params=pltpu.CompilerParams(
            dimension_semantics=("parallel",)),
    )(xs, w_slab, r_slab)


def net_forward(x, w_slab, r_slab):
    """Single forward matching the PyTorch module: (BATCH_SIZE, -1) -> (BATCH_SIZE, 2)."""
    x = x.reshape(BATCH_SIZE, -1).astype(jnp.float32)
    return net_forward_batched(x[None], w_slab, r_slab)[0]


def net_forward_ref(x, params):
    """Pure-JAX f32 reference for correctness checking (unfused weights)."""
    h = x.reshape(BATCH_SIZE, -1).astype(jnp.float32)
    (w1, b1), (w2, b2), (w31, b31), (w32, b32), \
        (w41, b41), (w42, b42), (w51, b51), (w52, b52) = params
    relu = lambda v: jnp.maximum(v, 0.0)
    h1 = relu(h @ w1 + b1)
    h2 = relu(h1 @ w2 + b2)
    x3 = relu(h2 @ w31 + b31)
    y3 = relu(h2 @ w32 + b32)
    x4 = relu(x3 @ w41 + b41)
    y4 = relu(y3 @ w42 + b42)
    x5 = relu(x4 @ w51 + b51)
    y5 = relu(y4 @ w52 + b52)
    return jnp.concatenate([x5, y5], axis=1)


def net_forward_ref_bf16(x, params):
    """Pure-JAX reference mirroring the kernel's bf16-operand / f32-accum dots."""
    h = x.reshape(BATCH_SIZE, -1).astype(jnp.float32)
    (w1, b1), (w2, b2), (w31, b31), (w32, b32), \
        (w41, b41), (w42, b42), (w51, b51), (w52, b52) = params
    relu = lambda v: jnp.maximum(v, 0.0)
    bf = lambda v: v.astype(jnp.bfloat16)
    dot = lambda a, b: jnp.dot(bf(a), bf(b), preferred_element_type=jnp.float32)
    h1 = relu(h @ w1 + b1)                       # layer 1 stays f32 (as in kernel)
    h2 = relu(dot(h1, w2) + b2)
    x3 = relu(dot(h2, w31) + b31)
    y3 = relu(dot(h2, w32) + b32)
    x4 = relu(dot(x3, w41) + b41)
    y4 = relu(dot(y3, w42) + b42)
    x5 = relu(dot(x4, w51) + b51)
    y5 = relu(dot(y4, w52) + b52)
    return jnp.concatenate([x5, y5], axis=1)


if __name__ == "__main__":
    key = jax.random.PRNGKey(0)
    key, kx = jax.random.split(key)
    # Scalar input per example, batch of 20 -> (20, 1)
    x = jax.random.normal(kx, (BATCH_SIZE, INPUT_SIZE), jnp.float32)
    params = init_params(key)

    # Pack once (would be hoisted out of any serving loop).
    w_slab, r_slab = pack_params(params)

    # --- Single (20, 1) forward, matching PyTorch `Net.forward` semantics. ---
    out = jax.block_until_ready(net_forward(x, w_slab, r_slab))
    assert out.shape == (BATCH_SIZE, 2 * OUTPUT_SIZE), out.shape

    ref_bf16 = net_forward_ref_bf16(x, params)   # mirrors kernel numerics
    ref_f32 = net_forward_ref(x, params)         # full-precision reference
    assert jnp.allclose(out, ref_bf16, atol=1e-4, rtol=1e-4), "mismatch vs bf16 reference"
    assert jnp.allclose(out, ref_f32, atol=2e-2, rtol=2e-2), "mismatch vs f32 reference"

    # --- Batched path: 4 independent (20, 1) batches in one pallas_call. ---
    key, kxs = jax.random.split(key)
    xs = jax.random.normal(kxs, (4, BATCH_SIZE, INPUT_SIZE), jnp.float32)
    outs = jax.block_until_ready(net_forward_batched(xs, w_slab, r_slab))
    assert outs.shape == (4, BATCH_SIZE, 2 * OUTPUT_SIZE), outs.shape
    for i in range(4):
        ref_i = net_forward_ref(xs[i], params)
        assert jnp.allclose(outs[i], ref_i, atol=2e-2, rtol=2e-2), f"batch {i} mismatch"

    print("KERNEL_OK")
</pallas_src>

<mosaic_0001>
module attributes {stable_mosaic.version = 11 : i64} {
  func.func @net_kernel(%arg0: i32, %arg1: memref<1x20x1xf32, #tpu.memory_space<vmem>>, %arg2: memref<544x128xbf16, #tpu.memory_space<vmem>>, %arg3: memref<8x256xf32, #tpu.memory_space<vmem>>, %arg4: memref<1x20x2xf32, #tpu.memory_space<vmem>>) attributes {dimension_semantics = [#tpu.dimension_semantics<parallel>], iteration_bounds = array<i64: 1>, scalar_prefetch = 0 : i64, scratch_operands = 0 : i64, tpu.core_type = #tpu.core_type<tc>, window_params = [{transform_indices = @transform_0, window_bounds = array<i64: 1, 20, 1>}, {pipeline_mode = #tpu.pipeline_mode<synchronous>, transform_indices = @transform_1, window_bounds = array<i64: 544, 128>}, {pipeline_mode = #tpu.pipeline_mode<synchronous>, transform_indices = @transform_2, window_bounds = array<i64: 8, 256>}, {transform_indices = @transform_3, window_bounds = array<i64: 1, 20, 2>}]} {
    %c0 = arith.constant 0 : index
    %c0_0 = arith.constant 0 : index
    %c0_1 = arith.constant 0 : index
    %0 = vector.load %arg1[%c0, %c0_0, %c0_1] : memref<1x20x1xf32, #tpu.memory_space<vmem>>, vector<1x20x1xf32>
    %1 = vector.shape_cast %0 : vector<1x20x1xf32> to vector<20x1xf32>
    %c0_2 = arith.constant 0 : index
    %c0_3 = arith.constant 0 : index
    %2 = vector.load %arg3[%c0_2, %c0_3] : memref<8x256xf32, #tpu.memory_space<vmem>>, vector<1x256xf32>
    %c1 = arith.constant 1 : index
    %c0_4 = arith.constant 0 : index
    %3 = vector.load %arg3[%c1, %c0_4] : memref<8x256xf32, #tpu.memory_space<vmem>>, vector<1x256xf32>
    %c2 = arith.constant 2 : index
    %c0_5 = arith.constant 0 : index
    %4 = vector.load %arg3[%c2, %c0_5] : memref<8x256xf32, #tpu.memory_space<vmem>>, vector<1x128xf32>
    %c3 = arith.constant 3 : index
    %c0_6 = arith.constant 0 : index
    %5 = vector.load %arg3[%c3, %c0_6] : memref<8x256xf32, #tpu.memory_space<vmem>>, vector<1x128xf32>
    %c4 = arith.constant 4 : index
    %c0_7 = arith.constant 0 : index
    %6 = vector.load %arg3[%c4, %c0_7] : memref<8x256xf32, #tpu.memory_space<vmem>>, vector<1x32xf32>
    %c5 = arith.constant 5 : index
    %c0_8 = arith.constant 0 : index
    %7 = vector.load %arg3[%c5, %c0_8] : memref<8x256xf32, #tpu.memory_space<vmem>>, vector<1x2xf32>
    %8 = vector.broadcast %1 : vector<20x1xf32> to vector<20x256xf32>
    %9 = vector.broadcast %2 : vector<1x256xf32> to vector<20x256xf32>
    %10 = arith.mulf %8, %9 : vector<20x256xf32>
    %11 = vector.broadcast %3 : vector<1x256xf32> to vector<20x256xf32>
    %12 = arith.addf %10, %11 : vector<20x256xf32>
    %cst = arith.constant 0.000000e+00 : f32
    %13 = vector.broadcast %cst : f32 to vector<20x256xf32>
    %14 = arith.maximumf %12, %13 : vector<20x256xf32>
    %c0_9 = arith.constant 0 : index
    %c0_10 = arith.constant 0 : index
    %15 = vector.load %arg2[%c0_9, %c0_10] : memref<544x128xbf16, #tpu.memory_space<vmem>>, vector<256x128xbf16>
    %16 = arith.truncf %14 : vector<20x256xf32> to vector<20x256xbf16>
    %cst_11 = arith.constant dense<0.000000e+00> : vector<20x128xf32>
    %17 = tpu.matmul %16, %15, %cst_11 {dimension_numbers = #tpu.dot_dimension_numbers<[1], [0], [0], [1], [0, 0, 1, 1], [], []>} : vector<20x256xbf16>, vector<256x128xbf16>, vector<20x128xf32> -> vector<20x128xf32>
    %18 = vector.broadcast %4 : vector<1x128xf32> to vector<20x128xf32>
    %19 = arith.addf %17, %18 : vector<20x128xf32>
    %cst_12 = arith.constant 0.000000e+00 : f32
    %20 = vector.broadcast %cst_12 : f32 to vector<20x128xf32>
    %21 = arith.maximumf %19, %20 : vector<20x128xf32>
    %c256 = arith.constant 256 : index
    %c0_13 = arith.constant 0 : index
    %22 = vector.load %arg2[%c256, %c0_13] : memref<544x128xbf16, #tpu.memory_space<vmem>>, vector<128x128xbf16>
    %23 = arith.truncf %21 : vector<20x128xf32> to vector<20x128xbf16>
    %cst_14 = arith.constant dense<0.000000e+00> : vector<20x128xf32>
    %24 = tpu.matmul %23, %22, %cst_14 {dimension_numbers = #tpu.dot_dimension_numbers<[1], [0], [0], [1], [0, 0, 1, 1], [], []>} : vector<20x128xbf16>, vector<128x128xbf16>, vector<20x128xf32> -> vector<20x128xf32>
    %25 = vector.broadcast %5 : vector<1x128xf32> to vector<20x128xf32>
    %26 = arith.addf %24, %25 : vector<20x128xf32>
    %cst_15 = arith.constant 0.000000e+00 : f32
    %27 = vector.broadcast %cst_15 : f32 to vector<20x128xf32>
    %28 = arith.maximumf %26, %27 : vector<20x128xf32>
    %c384 = arith.constant 384 : index
    %c0_16 = arith.constant 0 : index
    %29 = vector.load %arg2[%c384, %c0_16] : memref<544x128xbf16, #tpu.memory_space<vmem>>, vector<128x32xbf16>
    %30 = arith.truncf %28 : vector<20x128xf32> to vector<20x128xbf16>
    %cst_17 = arith.constant dense<0.000000e+00> : vector<20x32xf32>
    %31 = tpu.matmul %30, %29, %cst_17 {dimension_numbers = #tpu.dot_dimension_numbers<[1], [0], [0], [1], [0, 0, 1, 1], [], []>} : vector<20x128xbf16>, vector<128x32xbf16>, vector<20x32xf32> -> vector<20x32xf32>
    %32 = vector.broadcast %6 : vector<1x32xf32> to vector<20x32xf32>
    %33 = arith.addf %31, %32 : vector<20x32xf32>
    %cst_18 = arith.constant 0.000000e+00 : f32
    %34 = vector.broadcast %cst_18 : f32 to vector<20x32xf32>
    %35 = arith.maximumf %33, %34 : vector<20x32xf32>
    %c512 = arith.constant 512 : index
    %c0_19 = arith.constant 0 : index
    %36 = vector.load %arg2[%c512, %c0_19] : memref<544x128xbf16, #tpu.memory_space<vmem>>, vector<32x2xbf16>
    %37 = arith.truncf %35 : vector<20x32xf32> to vector<20x32xbf16>
    %cst_20 = arith.constant dense<0.000000e+00> : vector<20x2xf32>
    %38 = tpu.matmul %37, %36, %cst_20 {dimension_numbers = #tpu.dot_dimension_numbers<[1], [0], [0], [1], [0, 0, 1, 1], [], []>} : vector<20x32xbf16>, vector<32x2xbf16>, vector<20x2xf32> -> vector<20x2xf32>
    %39 = vector.broadcast %7 : vector<1x2xf32> to vector<20x2xf32>
    %40 = arith.addf %38, %39 : vector<20x2xf32>
    %cst_21 = arith.constant 0.000000e+00 : f32
    %41 = vector.broadcast %cst_21 : f32 to vector<20x2xf32>
    %42 = arith.maximumf %40, %41 : vector<20x2xf32>
    %c0_22 = arith.constant 0 : index
    %c0_23 = arith.constant 0 : index
    %c0_24 = arith.constant 0 : index
    %43 = vector.load %arg4[%c0_22, %c0_23, %c0_24] : memref<1x20x2xf32, #tpu.memory_space<vmem>>, vector<1x20x2xf32>
    %44 = vector.shape_cast %43 : vector<1x20x2xf32> to vector<20x2xf32>
    %45 = vector.shape_cast %42 : vector<20x2xf32> to vector<1x20x2xf32>
    tpu.vector_store %arg4[%c0_22, %c0_23, %c0_24], %45 {strides = array<i32>} : memref<1x20x2xf32, #tpu.memory_space<vmem>>, vector<1x20x2xf32>,
    return
  }
  func.func @transform_0(%arg0: i32) -> (i32, i32, i32) {
    %c0_i32 = arith.constant 0 : i32
    %c0_i32_0 = arith.constant 0 : i32
    %c0_i32_1 = arith.constant 0 : i32
    return %arg0, %c0_i32, %c0_i32_0 : i32, i32, i32
  }
  func.func @transform_1(%arg0: i32) -> (i32, i32) {
    %c0_i32 = arith.constant 0 : i32
    %c0_i32_0 = arith.constant 0 : i32
    %c0_i32_1 = arith.constant 0 : i32
    return %c0_i32, %c0_i32_0 : i32, i32
  }
  func.func @transform_2(%arg0: i32) -> (i32, i32) {
    %c0_i32 = arith.constant 0 : i32
    %c0_i32_0 = arith.constant 0 : i32
    %c0_i32_1 = arith.constant 0 : i32
    return %c0_i32, %c0_i32_0 : i32, i32
  }
  func.func @transform_3(%arg0: i32) -> (i32, i32, i32) {
    %c0_i32 = arith.constant 0 : i32
    %c0_i32_0 = arith.constant 0 : i32
    %c0_i32_1 = arith.constant 0 : i32
    return %arg0, %c0_i32, %c0_i32_0 : i32, i32, i32
  }
}

</mosaic_0001>

<llo_original>
// kernel: tpu_custom_call.1
$region0: #{tpu_custom_call.1}
  #allocation0 [shape = 'u32[]', space=smem, size = 0x4, offset = 0x4, fixed_abs, tag = 'smem constant byte address 0x4 - core index']
  #allocation1 [shape = 'u32[72,128]{1,0:T(1,128)}', space=vmem, size = 0x9000, scoped, tag = 'internal scratch']
  %s0 = inlined_call_operand.vmem [shape: f32[1,20,1], index: 0, kind: input, shape index: {}]
  %s1 = inlined_call_operand.hbm [shape: bf16[544,128], index: 1, kind: input, shape index: {}]
  %s2 = inlined_call_operand.vmem [shape: f32[8,256], index: 2, kind: input, shape index: {}]
  %s3 = inlined_call_operand.vmem [shape: f32[1,20,2], index: 3, kind: output, shape index: {}]
  %s4 = sld [smem:[#allocation0]]
  $region26: #{tpu_custom_call.1} parent=0
    _
  %s6 = ssub.s32 1, %s4
  %s7 = scalar_select 0, %s6, %s4
  $region1: #{tpu_custom_call.1} parent=0
    #allocation2 [shape = 'u8[139264]{0}', space=vmem, size = 0x22000, scoped, tag = 'input window, operand 1, single buffered']
    #allocation3 [shape = 's32[1]{0}', space=sflag, size = 0x4, scoped, tag = 'scoped memory for tpu_custom_call.1']
    %8 = vsyncpa [#allocation3], 0
    // Predicated region
    $region2: #{tpu_custom_call.1} parent=1 // pred_check
      _
    $region3: #{tpu_custom_call.1} parent=1 // pred_check_branch
      %10 = sbr.rel (0) target = $region5
    $region4: #{tpu_custom_call.1} parent=1 // pred_region
      _
    $region5: #{tpu_custom_call.1} parent=1 // pred_fallthru
      _
    // Predicated region
    $region6: #{tpu_custom_call.1} parent=1 // pred_check
      _
    $region7: #{tpu_custom_call.1} parent=1 // pred_check_branch
      %12 = sbr.rel (0) target = $region9
    $region8: #{tpu_custom_call.1} parent=1 // pred_region
      %14 = vsyncadd [#allocation3], 0
      %s15 = sshll.u32 %s1, 4
      %s16 = int_to_ptr.hbm [resolvable:$true] %s15
      %s17 = sshll.u32 [#allocation2], 4
      %s18 = int_to_ptr.vmem [resolvable:$true] %s17
      %23 = dma.hbm_to_vmem [thread:$0]  %s16, 4352, %s18, [#allocation3], 64, 64, 4
    $region9: #{tpu_custom_call.1} parent=1 // pred_fallthru
      _
    // Predicated region
    $region10: #{tpu_custom_call.1} parent=1 // pred_check
      _
    $region11: #{tpu_custom_call.1} parent=1 // pred_check_branch
      %25 = sbr.rel (0) target = $region13
    $region12: #{tpu_custom_call.1} parent=1 // pred_region
      _
    $region13: #{tpu_custom_call.1} parent=1 // pred_fallthru
      _
    // Predicated region
    $region14: #{tpu_custom_call.1} parent=1 // pred_check
      _
    $region15: #{tpu_custom_call.1} parent=1 // pred_check_branch
      %27 = sbr.rel (0) target = $region17
    $region16: #{tpu_custom_call.1} parent=1 // pred_region
      %29 = dma.done [#allocation3], 4352
    $region17: #{tpu_custom_call.1} parent=1 // pred_fallthru
      _
    %v31 = vld [vmem:[%s0] sm:$0xff]
    %v32 = vld [vmem:[%s0 + $0x8] sm:$0xff]
    %v33 = vld [vmem:[%s0 + $0x10] sm:$0xf]
    %v34 = vld [vmem:[%s2] ss:$8 sm:$0x3]
    %s35 = scalar_lea.vmem %s2, 1
    %v36 = vld [vmem:[%s35] ss:$8 sm:$0x3]
    %v37 = vld [vmem:[%s2 + $0x2] ss:$0 sm:$0xff]
    %v38 = vld [vmem:[%s2 + $0x3] ss:$0 sm:$0xff]
    %v39 = vld [vmem:[%s2 + $0x4] ss:$0 sm:$0xff]
    %v40 = vld [vmem:[%s2 + $0x5] ss:$0 sm:$0xff]
    %42 = vset.pattern.permute.xlu0 0
    %43 = vperm.xlu0 %42, %v31
    %v44 = vpop.permute.xlu0 %43
    %47 = vset.pattern.permute.xlu0 0
    %48 = vperm.xlu0 %47, %v32
    %v49 = vpop.permute.xlu0 %48
    %52 = vset.pattern.permute.xlu0 0
    %53 = vperm.xlu0 %52, %v33
    %v54 = vpop.permute.xlu0 %53
    %v57 = vperm.slane %v34, 0
    %v58 = vperm.slane %v34, 1
    %v61 = vmul.f32 %v44, %v57
    %v62 = vmul.f32 %v44, %v58
    %v63 = vmul.f32 %v49, %v57
    %v64 = vmul.f32 %v49, %v58
    %v65 = vmul.f32 %v54, %v57
    %v66 = vmul.f32 %v54, %v58
    %v68 = vperm.slane %v36, 0
    %v69 = vperm.slane %v36, 1
    %v72 = vadd.f32 %v61, %v68
    %v73 = vadd.f32 %v62, %v69
    %v74 = vadd.f32 %v63, %v68
    %v75 = vadd.f32 %v64, %v69
    %v76 = vadd.f32 %v65, %v68
    %v77 = vadd.f32 %v66, %v69
    %v78 = vmax.f32 %v72, 0.0
    %v79 = vmax.f32 %v73, 0.0
    %v80 = vmax.f32 %v74, 0.0
    %v81 = vmax.f32 %v75, 0.0
    %v82 = vmax.f32 %v76, 0.0
    %v83 = vmax.f32 %v77, 0.0
    %v84 = vld [vmem:[#allocation2] sm:$0xf]
    %v85 = vld [vmem:[#allocation2 + $0x4] sm:$0xf]
    %v86 = vld [vmem:[#allocation2 + $0x8] sm:$0xf]
    %v87 = vld [vmem:[#allocation2 + $0xc] sm:$0xf]
    %v88 = vld [vmem:[#allocation2 + $0x10] sm:$0xf]
    %v89 = vld [vmem:[#allocation2 + $0x14] sm:$0xf]
    %v90 = vld [vmem:[#allocation2 + $0x18] sm:$0xf]
    %v91 = vld [vmem:[#allocation2 + $0x1c] sm:$0xf]
    %v92 = vld [vmem:[#allocation2 + $0x20] sm:$0xf]
    %v93 = vld [vmem:[#allocation2 + $0x24] sm:$0xf]
    %v94 = vld [vmem:[#allocation2 + $0x28] sm:$0xf]
    %v95 = vld [vmem:[#allocation2 + $0x2c] sm:$0xf]
    %v96 = vld [vmem:[#allocation2 + $0x30] sm:$0xf]
    %v97 = vld [vmem:[#allocation2 + $0x34] sm:$0xf]
    %v98 = vld [vmem:[#allocation2 + $0x38] sm:$0xf]
    %v99 = vld [vmem:[#allocation2 + $0x3c] sm:$0xf]
    %v100 = vld [vmem:[#allocation2 + $0x40] sm:$0xf]
    %v101 = vld [vmem:[#allocation2 + $0x44] sm:$0xf]
    %v102 = vld [vmem:[#allocation2 + $0x48] sm:$0xf]
    %v103 = vld [vmem:[#allocation2 + $0x4c] sm:$0xf]
    %v104 = vld [vmem:[#allocation2 + $0x50] sm:$0xf]
    %v105 = vld [vmem:[#allocation2 + $0x54] sm:$0xf]
    %v106 = vld [vmem:[#allocation2 + $0x58] sm:$0xf]
    %v107 = vld [vmem:[#allocation2 + $0x5c] sm:$0xf]
    %v108 = vld [vmem:[#allocation2 + $0x60] sm:$0xf]
    %v109 = vld [vmem:[#allocation2 + $0x64] sm:$0xf]
    %v110 = vld [vmem:[#allocation2 + $0x68] sm:$0xf]
    %v111 = vld [vmem:[#allocation2 + $0x6c] sm:$0xf]
    %v112 = vld [vmem:[#allocation2 + $0x70] sm:$0xf]
    %v113 = vld [vmem:[#allocation2 + $0x74] sm:$0xf]
    %v114 = vld [vmem:[#allocation2 + $0x78] sm:$0xf]
    %v115 = vld [vmem:[#allocation2 + $0x7c] sm:$0xf]
    %v116 = vpack.c.bf16 %v80, %v78
    %v117 = vpack.c.bf16 %v81, %v79
    %v118 = vpack.c.bf16 %v82, %v82
    %v119 = vpack.c.bf16 %v83, %v83
    %v152 = vunpack.c.l.b16 %v84
    %v153 = vunpack.c.l.b16 %v85
    %v154 = vunpack.c.l.b16 %v86
    %v155 = vunpack.c.l.b16 %v87
    %v156 = vunpack.c.l.b16 %v88
    %v157 = vunpack.c.l.b16 %v89
    %v158 = vunpack.c.l.b16 %v90
    %v159 = vunpack.c.l.b16 %v91
    %v160 = vunpack.c.l.b16 %v92
    %v161 = vunpack.c.l.b16 %v93
    %v162 = vunpack.c.l.b16 %v94
    %v163 = vunpack.c.l.b16 %v95
    %v164 = vunpack.c.l.b16 %v96
    %v165 = vunpack.c.l.b16 %v97
    %v166 = vunpack.c.l.b16 %v98
    %v167 = vunpack.c.l.b16 %v99
    %v168 = vunpack.c.l.b16 %v100
    %v169 = vunpack.c.l.b16 %v101
    %v170 = vunpack.c.l.b16 %v102
    %v171 = vunpack.c.l.b16 %v103
    %v172 = vunpack.c.l.b16 %v104
    %v173 = vunpack.c.l.b16 %v105
    %v174 = vunpack.c.l.b16 %v106
    %v175 = vunpack.c.l.b16 %v107
    %v176 = vunpack.c.l.b16 %v108
    %v177 = vunpack.c.l.b16 %v109
    %v178 = vunpack.c.l.b16 %v110
    %v179 = vunpack.c.l.b16 %v111
    %v180 = vunpack.c.l.b16 %v112
    %v181 = vunpack.c.l.b16 %v113
    %v182 = vunpack.c.l.b16 %v114
    %v183 = vunpack.c.l.b16 %v115
    %v184 = vpack.c.b16 %v153, %v152
    %v185 = vpack.c.b16 %v155, %v154
    %v186 = vpack.c.b16 %v157, %v156
    %v187 = vpack.c.b16 %v159, %v158
    %v188 = vpack.c.b16 %v161, %v160
    %v189 = vpack.c.b16 %v163, %v162
    %v190 = vpack.c.b16 %v165, %v164
    %v191 = vpack.c.b16 %v167, %v166
    %v192 = vpack.c.b16 %v169, %v168
    %v193 = vpack.c.b16 %v171, %v170
    %v194 = vpack.c.b16 %v173, %v172
    %v195 = vpack.c.b16 %v175, %v174
    %v196 = vpack.c.b16 %v177, %v176
    %v197 = vpack.c.b16 %v179, %v178
    %v198 = vpack.c.b16 %v181, %v180
    %v199 = vpack.c.b16 %v183, %v182
    %216 = vmatpush.bf16.msra.mxu0 %v191
    %217 = vmatpush.bf16.msra.mxu0 %v190
    %218 = vmatpush.bf16.msra.mxu0 %v189
    %219 = vmatpush.bf16.msra.mxu0 %v188
    %220 = vmatpush.bf16.msra.mxu0 %v187
    %221 = vmatpush.bf16.msra.mxu0 %v186
    %222 = vmatpush.bf16.msra.mxu0 %v185
    %223 = vmatpush.bf16.msra.mxu0 %v184
    %224 = vmatmul.bf16.gmra.mxu0 %v116
    %v225 = vpop.f32.mrf.mxu0
    %v226 = vadd.f32 %v37, %v225
    %v227 = vpop.f32.mrf.mxu0
    %v228 = vadd.f32 %v37, %v227
    %229 = vmatmul.bf16.gmra.mxu0 %v118
    %v230 = vpop.f32.mrf.mxu0
    %v231 = vadd.f32 %v37, %v230
    %v232 = vpop.f32.mrf.mxu0
    %233 = vdwg.mxu0
    %234 = vmatpush.bf16.msra.mxu0 %v199
    %235 = vmatpush.bf16.msra.mxu0 %v198
    %236 = vmatpush.bf16.msra.mxu0 %v197
    %237 = vmatpush.bf16.msra.mxu0 %v196
    %238 = vmatpush.bf16.msra.mxu0 %v195
    %239 = vmatpush.bf16.msra.mxu0 %v194
    %240 = vmatpush.bf16.msra.mxu0 %v193
    %241 = vmatpush.bf16.msra.mxu0 %v192
    %242 = vmatmul.bf16.gmra.mxu0 %v117
    %v243 = vpop.f32.mrf.mxu0
    %v244 = vadd.f32 %v226, %v243
    %v245 = vpop.f32.mrf.mxu0
    %v246 = vadd.f32 %v228, %v245
    %247 = vmatmul.bf16.gmra.mxu0 %v119
    %v248 = vpop.f32.mrf.mxu0
    %v249 = vadd.f32 %v231, %v248
    %v250 = vpop.f32.mrf.mxu0
    %251 = vdwg.mxu0
    %v252 = vmax.f32 %v244, 0.0
    %v253 = vmax.f32 %v246, 0.0
    %v254 = vmax.f32 %v249, 0.0
    %v255 = vld [vmem:[#allocation2 + $0x80] sm:$0xf]
    %v256 = vld [vmem:[#allocation2 + $0x84] sm:$0xf]
    %v257 = vld [vmem:[#allocation2 + $0x88] sm:$0xf]
    %v258 = vld [vmem:[#allocation2 + $0x8c] sm:$0xf]
    %v259 = vld [vmem:[#allocation2 + $0x90] sm:$0xf]
    %v260 = vld [vmem:[#allocation2 + $0x94] sm:$0xf]
    %v261 = vld [vmem:[#allocation2 + $0x98] sm:$0xf]
    %v262 = vld [vmem:[#allocation2 + $0x9c] sm:$0xf]
    %v263 = vld [vmem:[#allocation2 + $0xa0] sm:$0xf]
    %v264 = vld [vmem:[#allocation2 + $0xa4] sm:$0xf]
    %v265 = vld [vmem:[#allocation2 + $0xa8] sm:$0xf]
    %v266 = vld [vmem:[#allocation2 + $0xac] sm:$0xf]
    %v267 = vld [vmem:[#allocation2 + $0xb0] sm:$0xf]
    %v268 = vld [vmem:[#allocation2 + $0xb4] sm:$0xf]
    %v269 = vld [vmem:[#allocation2 + $0xb8] sm:$0xf]
    %v270 = vld [vmem:[#allocation2 + $0xbc] sm:$0xf]
    %v271 = vpack.c.bf16 %v253, %v252
    %v272 = vpack.c.bf16 %v254, %v254
    %v289 = vunpack.c.l.b16 %v255
    %v290 = vunpack.c.l.b16 %v256
    %v291 = vunpack.c.l.b16 %v257
    %v292 = vunpack.c.l.b16 %v258
    %v293 = vunpack.c.l.b16 %v259
    %v294 = vunpack.c.l.b16 %v260
    %v295 = vunpack.c.l.b16 %v261
    %v296 = vunpack.c.l.b16 %v262
    %v297 = vunpack.c.l.b16 %v263
    %v298 = vunpack.c.l.b16 %v264
    %v299 = vunpack.c.l.b16 %v265
    %v300 = vunpack.c.l.b16 %v266
    %v301 = vunpack.c.l.b16 %v267
    %v302 = vunpack.c.l.b16 %v268
    %v303 = vunpack.c.l.b16 %v269
    %v304 = vunpack.c.l.b16 %v270
    %v305 = vpack.c.b16 %v290, %v289
    %v306 = vpack.c.b16 %v292, %v291
    %v307 = vpack.c.b16 %v294, %v293
    %v308 = vpack.c.b16 %v296, %v295
    %v309 = vpack.c.b16 %v298, %v297
    %v310 = vpack.c.b16 %v300, %v299
    %v311 = vpack.c.b16 %v302, %v301
    %v312 = vpack.c.b16 %v304, %v303
    %321 = vmatpush.bf16.msra.mxu0 %v312
    %322 = vmatpush.bf16.msra.mxu0 %v311
    %323 = vmatpush.bf16.msra.mxu0 %v310
    %324 = vmatpush.bf16.msra.mxu0 %v309
    %325 = vmatpush.bf16.msra.mxu0 %v308
    %326 = vmatpush.bf16.msra.mxu0 %v307
    %327 = vmatpush.bf16.msra.mxu0 %v306
    %328 = vmatpush.bf16.msra.mxu0 %v305
    %329 = vmatmul.bf16.gmra.mxu0 %v271
    %v330 = vpop.f32.mrf.mxu0
    %v331 = vadd.f32 %v38, %v330
    %v332 = vpop.f32.mrf.mxu0
    %v333 = vadd.f32 %v38, %v332
    %334 = vmatmul.bf16.gmra.mxu0 %v272
    %v335 = vpop.f32.mrf.mxu0
    %v336 = vadd.f32 %v38, %v335
    %v337 = vpop.f32.mrf.mxu0
    %338 = vdwg.mxu0
    %v339 = vmax.f32 %v331, 0.0
    %v340 = vmax.f32 %v333, 0.0
    %v341 = vmax.f32 %v336, 0.0
    %v342 = vld [vmem:[#allocation2 + $0xc0] sm:$0xf]
    %v343 = vld [vmem:[#allocation2 + $0xc4] sm:$0xf]
    %v344 = vld [vmem:[#allocation2 + $0xc8] sm:$0xf]
    %v345 = vld [vmem:[#allocation2 + $0xcc] sm:$0xf]
    %v346 = vld [vmem:[#allocation2 + $0xd0] sm:$0xf]
    %v347 = vld [vmem:[#allocation2 + $0xd4] sm:$0xf]
    %v348 = vld [vmem:[#allocation2 + $0xd8] sm:$0xf]
    %v349 = vld [vmem:[#allocation2 + $0xdc] sm:$0xf]
    %v350 = vld [vmem:[#allocation2 + $0xe0] sm:$0xf]
    %v351 = vld [vmem:[#allocation2 + $0xe4] sm:$0xf]
    %v352 = vld [vmem:[#allocation2 + $0xe8] sm:$0xf]
    %v353 = vld [vmem:[#allocation2 + $0xec] sm:$0xf]
    %v354 = vld [vmem:[#allocation2 + $0xf0] sm:$0xf]
    %v355 = vld [vmem:[#allocation2 + $0xf4] sm:$0xf]
    %v356 = vld [vmem:[#allocation2 + $0xf8] sm:$0xf]
    %v357 = vld [vmem:[#allocation2 + $0xfc] sm:$0xf]
    %v358 = vpack.c.bf16 %v340, %v339
    %v359 = vpack.c.bf16 %v341, %v341
    %v376 = vunpack.c.l.b16 %v342
    %v377 = vunpack.c.l.b16 %v343
    %v378 = vunpack.c.l.b16 %v344
    %v379 = vunpack.c.l.b16 %v345
    %v380 = vunpack.c.l.b16 %v346
    %v381 = vunpack.c.l.b16 %v347
    %v382 = vunpack.c.l.b16 %v348
    %v383 = vunpack.c.l.b16 %v349
    %v384 = vunpack.c.l.b16 %v350
    %v385 = vunpack.c.l.b16 %v351
    %v386 = vunpack.c.l.b16 %v352
    %v387 = vunpack.c.l.b16 %v353
    %v388 = vunpack.c.l.b16 %v354
    %v389 = vunpack.c.l.b16 %v355
    %v390 = vunpack.c.l.b16 %v356
    %v391 = vunpack.c.l.b16 %v357
    %v392 = vpack.c.b16 %v377, %v376
    %v393 = vpack.c.b16 %v379, %v378
    %v394 = vpack.c.b16 %v381, %v380
    %v395 = vpack.c.b16 %v383, %v382
    %v396 = vpack.c.b16 %v385, %v384
    %v397 = vpack.c.b16 %v387, %v386
    %v398 = vpack.c.b16 %v389, %v388
    %v399 = vpack.c.b16 %v391, %v390
    %408 = vmatpush.bf16.msra.mxu0 %v399
    %409 = vmatpush.bf16.msra.mxu0 %v398
    %410 = vmatpush.bf16.msra.mxu0 %v397
    %411 = vmatpush.bf16.msra.mxu0 %v396
    %412 = vmatpush.bf16.msra.mxu0 %v395
    %413 = vmatpush.bf16.msra.mxu0 %v394
    %414 = vmatpush.bf16.msra.mxu0 %v393
    %415 = vmatpush.bf16.msra.mxu0 %v392
    %416 = vmatmul.bf16.gmra.mxu0 %v358
    %v417 = vpop.f32.mrf.mxu0
    %v418 = vadd.f32 %v39, %v417
    %v419 = vpop.f32.mrf.mxu0
    %v420 = vadd.f32 %v39, %v419
    %421 = vmatmul.bf16.gmra.mxu0 %v359
    %v422 = vpop.f32.mrf.mxu0
    %v423 = vadd.f32 %v39, %v422
    %v424 = vpop.f32.mrf.mxu0
    %425 = vdwg.mxu0
    %v426 = vmax.f32 %v418, 0.0
    %v427 = vmax.f32 %v420, 0.0
    %v428 = vmax.f32 %v423, 0.0
    %v429 = vld [vmem:[#allocation2 + $0x100] sm:$0xf]
    %v430 = vld [vmem:[#allocation2 + $0x104] sm:$0xf]
    %v431 = vld [vmem:[#allocation2 + $0x108] sm:$0xf]
    %v432 = vld [vmem:[#allocation2 + $0x10c] sm:$0xf]
    %v433 = vpack.c.bf16 %v427, %v426
    %v434 = vpack.c.bf16 %v428, %v428
    %v439 = vunpack.c.l.b16 %v429
    %v440 = vunpack.c.l.b16 %v430
    %v441 = vunpack.c.l.b16 %v431
    %v442 = vunpack.c.l.b16 %v432
    %v443 = vpack.c.b16 %v440, %v439
    %v444 = vpack.c.b16 %v442, %v441
    %vm447 = vcmask 261120
    %v449 = vsel %vm447, %v433, 0
    %v452 = vsel %vm447, %v434, 0
    %454 = vmatpush.bf16.msra.mxu0 0
    %455 = vmatpush.bf16.msra.mxu0 0
    %456 = vmatpush.bf16.msra.mxu0 0
    %457 = vmatpush.bf16.msra.mxu0 0
    %458 = vmatpush.bf16.msra.mxu0 0
    %459 = vmatpush.bf16.msra.mxu0 0
    %460 = vmatpush.bf16.msra.mxu0 %v444
    %461 = vmatpush.bf16.msra.mxu0 %v443
    %462 = vmatmul.bf16.gmra.mxu0 %v449
    %v463 = vpop.f32.mrf.mxu0
    %v464 = vadd.f32 %v40, %v463
    %v465 = vpop.f32.mrf.mxu0
    %v466 = vadd.f32 %v40, %v465
    %467 = vmatmul.bf16.gmra.mxu0 %v452
    %v468 = vpop.f32.mrf.mxu0
    %v469 = vadd.f32 %v40, %v468
    %v470 = vpop.f32.mrf.mxu0
    %471 = vdwg.mxu0
    %v472 = vmax.f32 %v464, 0.0
    %v473 = vmax.f32 %v466, 0.0
    %v474 = vmax.f32 %v469, 0.0
    %vm475 = vcmask 15360
    %476 = vst.msk [vmem:[%s3] sm:$0xff] %vm475, %v472
    %477 = vst.msk [vmem:[%s3 + $0x8] sm:$0xff] %vm475, %v473
    %vm478 = vcmask 11264
    %479 = vst.msk [vmem:[%s3 + $0x10] sm:$0xf] %vm478, %v474
    // Predicated region
    $region18: #{tpu_custom_call.1} parent=1 // pred_check
      _
    $region19: #{tpu_custom_call.1} parent=1 // pred_check_branch
      %481 = sbr.rel (0) target = $region21
    $region20: #{tpu_custom_call.1} parent=1 // pred_region
      _
    $region21: #{tpu_custom_call.1} parent=1 // pred_fallthru
      _
    // Predicated region
    $region22: #{tpu_custom_call.1} parent=1 // pred_check
      _
    $region23: #{tpu_custom_call.1} parent=1 // pred_check_branch
      %483 = sbr.rel (0) target = $region25
    $region24: #{tpu_custom_call.1} parent=1 // pred_region
      _
    $region25: #{tpu_custom_call.1} parent=1 // pred_fallthru
      _
    %484 = vsyncpa [#allocation3], 1

</llo_original>
